<compile_context>
chip_gen: v5e
topology: v5e:2x2
jax: 0.10.0
libtpu: 0.0.40
codegen_flags: <defaults>
</compile_context>

<pallas_src>
import functools

import jax
import jax.numpy as jnp
from jax.experimental import pallas as pl
from jax.experimental.pallas import tpu as pltpu


def _round_up(n: int, m: int) -> int:
    return -(-n // m) * m


def mlp_kernel(x_ref, w1_ref, b1_ref, w2_ref, b2_ref, w3_ref, b3_ref, o_ref):
    """Whole 3-layer MLP fused in one kernel invocation (per batch tile)."""
    x = x_ref[...]

    h1 = jnp.dot(x, w1_ref[...], preferred_element_type=jnp.float32) + b1_ref[...]
    h1 = jnp.maximum(h1, 0.0)  # ReLU on the VPU (f32)

    h2 = jnp.dot(h1, w2_ref[...], preferred_element_type=jnp.float32) + b2_ref[...]
    h2 = jnp.maximum(h2, 0.0)  # ReLU on the VPU (f32)

    out = jnp.dot(h2, w3_ref[...], preferred_element_type=jnp.float32) + b3_ref[...]
    o_ref[...] = out.astype(o_ref.dtype)


@functools.partial(jax.jit, static_argnames=("block_b",))
def network_forward(x, w1, b1, w2, b2, w3, b3, *, block_b=256):
    """Forward pass of the 3-layer MLP.  x: (B, in_dim) f32."""
    B, in_dim = x.shape
    hidden = w1.shape[1]
    out_dim = w3.shape[1]

    # --- pad the ragged dims so every tile is (8,128)-aligned -------------
    in_pad = _round_up(max(in_dim, 8), 8)          # sublane-aligned K for layer 1
    if in_pad != in_dim:
        x = jnp.pad(x, ((0, 0), (0, in_pad - in_dim)))
        w1 = jnp.pad(w1, ((0, in_pad - in_dim), (0, 0)))

    out_pad = _round_up(max(out_dim, 128), 128)    # lane-dense output store
    if out_pad != out_dim:
        w3 = jnp.pad(w3, ((0, 0), (0, out_pad - out_dim)))
        b3 = jnp.pad(b3, ((0, 0), (0, out_pad - out_dim)))

    # --- batch tiling ------------------------------------------------------
    bb = min(block_b, B)
    if bb < B:
        bb = _round_up(bb, 8)                      # sublane-aligned batch tile
    grid = (pl.cdiv(B, bb),)

    in_specs = [
        pl.BlockSpec((bb, in_pad), lambda i: (i, 0)),       # x tile (pipelined)
        pl.BlockSpec((in_pad, hidden), lambda i: (0, 0)),    # W1 (resident)
        pl.BlockSpec((1, hidden), lambda i: (0, 0)),          # b1
        pl.BlockSpec((hidden, hidden), lambda i: (0, 0)),     # W2
        pl.BlockSpec((1, hidden), lambda i: (0, 0)),          # b2
        pl.BlockSpec((hidden, out_pad), lambda i: (0, 0)),    # W3 (lane-padded)
        pl.BlockSpec((1, out_pad), lambda i: (0, 0)),         # b3 (lane-padded)
    ]
    out_spec = pl.BlockSpec((bb, out_pad), lambda i: (i, 0))

    out_padded = pl.pallas_call(
        mlp_kernel,
        out_shape=jax.ShapeDtypeStruct((B, out_pad), x.dtype),
        grid_spec=pltpu.PrefetchScalarGridSpec(
            num_scalar_prefetch=0,
            grid=grid,
            in_specs=in_specs,
            out_specs=out_spec,
        ),
        compiler_params=pltpu.CompilerParams(
            dimension_semantics=("parallel",),   # shards batch tiles across TCs (v7x)
        ),
    )(x, w1, b1, w2, b2, w3, b3)

    # Strip the lane padding back down to the real action dimension.
    return out_padded[:, :out_dim]


def init_linear_params(key, fan_in, fan_out):
    """Deterministic init mimicking PyTorch nn.Linear default (uniform +-1/sqrt(fan_in))."""
    kw, kb = jax.random.split(key)
    bound = 1.0 / jnp.sqrt(jnp.float32(fan_in))
    # Stored directly as (in, out) so kernel computes x @ W.
    w = jax.random.uniform(kw, (fan_in, fan_out), jnp.float32, -bound, bound)
    b = jax.random.uniform(kb, (1, fan_out), jnp.float32, -bound, bound)
    return w, b


def _reference(x, w1, b1, w2, b2, w3, b3):
    h = jnp.maximum(x @ w1 + b1, 0.0)
    h = jnp.maximum(h @ w2 + b2, 0.0)
    return h @ w3 + b3


if __name__ == "__main__":
    key = jax.random.PRNGKey(0)
    k_x, k1, k2, k3, k_x2 = jax.random.split(key, 5)

    # Small shapes consistent with the module: in_dim=4 obs dims, out_dim=2 actions.
    in_dim, hidden, out_dim = 4, 128, 2

    w1, b1 = init_linear_params(k1, in_dim, hidden)
    w2, b2 = init_linear_params(k2, hidden, hidden)
    w3, b3 = init_linear_params(k3, hidden, out_dim)

    # --- single-tile path (tiny batch -> grid=(1,)) ------------------------
    B = 32
    x = jax.random.normal(k_x, (B, in_dim), jnp.float32)
    out = jax.block_until_ready(network_forward(x, w1, b1, w2, b2, w3, b3))
    ref = _reference(x, w1, b1, w2, b2, w3, b3)
    assert out.shape == (B, out_dim)
    assert jnp.allclose(out, ref, atol=1e-5, rtol=1e-5), "mismatch vs reference (B=32)"

    # --- multi-tile path with a ragged last tile ---------------------------
    B2 = 300
    x2 = jax.random.normal(k_x2, (B2, in_dim), jnp.float32)
    out2 = jax.block_until_ready(
        network_forward(x2, w1, b1, w2, b2, w3, b3, block_b=128)
    )
    ref2 = _reference(x2, w1, b1, w2, b2, w3, b3)
    assert out2.shape == (B2, out_dim)
    assert jnp.allclose(out2, ref2, atol=1e-5, rtol=1e-5), "mismatch vs reference (B=300)"

    print("KERNEL_OK")
</pallas_src>

<mosaic_0001>
module attributes {stable_mosaic.version = 11 : i64} {
  func.func @mlp_kernel(%arg0: i32, %arg1: memref<32x8xf32, #tpu.memory_space<vmem>>, %arg2: memref<8x128xf32, #tpu.memory_space<vmem>>, %arg3: memref<1x128xf32, #tpu.memory_space<vmem>>, %arg4: memref<128x128xf32, #tpu.memory_space<vmem>>, %arg5: memref<1x128xf32, #tpu.memory_space<vmem>>, %arg6: memref<128x128xf32, #tpu.memory_space<vmem>>, %arg7: memref<1x128xf32, #tpu.memory_space<vmem>>, %arg8: memref<32x128xf32, #tpu.memory_space<vmem>>) attributes {dimension_semantics = [#tpu.dimension_semantics<parallel>], iteration_bounds = array<i64: 1>, scalar_prefetch = 0 : i64, scratch_operands = 0 : i64, tpu.core_type = #tpu.core_type<tc>, window_params = [{transform_indices = @transform_0, window_bounds = array<i64: 32, 8>}, {pipeline_mode = #tpu.pipeline_mode<synchronous>, transform_indices = @transform_1, window_bounds = array<i64: 8, 128>}, {pipeline_mode = #tpu.pipeline_mode<synchronous>, transform_indices = @transform_2, window_bounds = array<i64: 1, 128>}, {pipeline_mode = #tpu.pipeline_mode<synchronous>, transform_indices = @transform_3, window_bounds = array<i64: 128, 128>}, {pipeline_mode = #tpu.pipeline_mode<synchronous>, transform_indices = @transform_4, window_bounds = array<i64: 1, 128>}, {pipeline_mode = #tpu.pipeline_mode<synchronous>, transform_indices = @transform_5, window_bounds = array<i64: 128, 128>}, {pipeline_mode = #tpu.pipeline_mode<synchronous>, transform_indices = @transform_6, window_bounds = array<i64: 1, 128>}, {transform_indices = @transform_7, window_bounds = array<i64: 32, 128>}]} {
    %c0 = arith.constant 0 : index
    %c0_0 = arith.constant 0 : index
    %0 = vector.load %arg1[%c0, %c0_0] : memref<32x8xf32, #tpu.memory_space<vmem>>, vector<32x8xf32>
    %c0_1 = arith.constant 0 : index
    %c0_2 = arith.constant 0 : index
    %1 = vector.load %arg2[%c0_1, %c0_2] : memref<8x128xf32, #tpu.memory_space<vmem>>, vector<8x128xf32>
    %cst = arith.constant dense<0.000000e+00> : vector<32x128xf32>
    %2 = tpu.matmul %0, %1, %cst {dimension_numbers = #tpu.dot_dimension_numbers<[1], [0], [0], [1], [0, 0, 1, 1], [], []>} : vector<32x8xf32>, vector<8x128xf32>, vector<32x128xf32> -> vector<32x128xf32>
    %c0_3 = arith.constant 0 : index
    %c0_4 = arith.constant 0 : index
    %3 = vector.load %arg3[%c0_3, %c0_4] : memref<1x128xf32, #tpu.memory_space<vmem>>, vector<1x128xf32>
    %4 = vector.broadcast %3 : vector<1x128xf32> to vector<32x128xf32>
    %5 = arith.addf %2, %4 : vector<32x128xf32>
    %cst_5 = arith.constant 0.000000e+00 : f32
    %6 = vector.broadcast %cst_5 : f32 to vector<32x128xf32>
    %7 = arith.maximumf %5, %6 : vector<32x128xf32>
    %c0_6 = arith.constant 0 : index
    %c0_7 = arith.constant 0 : index
    %8 = vector.load %arg4[%c0_6, %c0_7] : memref<128x128xf32, #tpu.memory_space<vmem>>, vector<128x128xf32>
    %cst_8 = arith.constant dense<0.000000e+00> : vector<32x128xf32>
    %9 = tpu.matmul %7, %8, %cst_8 {dimension_numbers = #tpu.dot_dimension_numbers<[1], [0], [0], [1], [0, 0, 1, 1], [], []>} : vector<32x128xf32>, vector<128x128xf32>, vector<32x128xf32> -> vector<32x128xf32>
    %c0_9 = arith.constant 0 : index
    %c0_10 = arith.constant 0 : index
    %10 = vector.load %arg5[%c0_9, %c0_10] : memref<1x128xf32, #tpu.memory_space<vmem>>, vector<1x128xf32>
    %11 = vector.broadcast %10 : vector<1x128xf32> to vector<32x128xf32>
    %12 = arith.addf %9, %11 : vector<32x128xf32>
    %cst_11 = arith.constant 0.000000e+00 : f32
    %13 = vector.broadcast %cst_11 : f32 to vector<32x128xf32>
    %14 = arith.maximumf %12, %13 : vector<32x128xf32>
    %c0_12 = arith.constant 0 : index
    %c0_13 = arith.constant 0 : index
    %15 = vector.load %arg6[%c0_12, %c0_13] : memref<128x128xf32, #tpu.memory_space<vmem>>, vector<128x128xf32>
    %cst_14 = arith.constant dense<0.000000e+00> : vector<32x128xf32>
    %16 = tpu.matmul %14, %15, %cst_14 {dimension_numbers = #tpu.dot_dimension_numbers<[1], [0], [0], [1], [0, 0, 1, 1], [], []>} : vector<32x128xf32>, vector<128x128xf32>, vector<32x128xf32> -> vector<32x128xf32>
    %c0_15 = arith.constant 0 : index
    %c0_16 = arith.constant 0 : index
    %17 = vector.load %arg7[%c0_15, %c0_16] : memref<1x128xf32, #tpu.memory_space<vmem>>, vector<1x128xf32>
    %18 = vector.broadcast %17 : vector<1x128xf32> to vector<32x128xf32>
    %19 = arith.addf %16, %18 : vector<32x128xf32>
    %c0_17 = arith.constant 0 : index
    %c0_18 = arith.constant 0 : index
    %20 = vector.load %arg8[%c0_17, %c0_18] : memref<32x128xf32, #tpu.memory_space<vmem>>, vector<32x128xf32>
    tpu.vector_store %arg8[%c0_17, %c0_18], %19 {strides = array<i32>} : memref<32x128xf32, #tpu.memory_space<vmem>>, vector<32x128xf32>,
    return
  }
  func.func @transform_0(%arg0: i32) -> (i32, i32) {
    %c0_i32 = arith.constant 0 : i32
    %c0_i32_0 = arith.constant 0 : i32
    return %arg0, %c0_i32 : i32, i32
  }
  func.func @transform_1(%arg0: i32) -> (i32, i32) {
    %c0_i32 = arith.constant 0 : i32
    %c0_i32_0 = arith.constant 0 : i32
    %c0_i32_1 = arith.constant 0 : i32
    return %c0_i32, %c0_i32_0 : i32, i32
  }
  func.func @transform_2(%arg0: i32) -> (i32, i32) {
    %c0_i32 = arith.constant 0 : i32
    %c0_i32_0 = arith.constant 0 : i32
    %c0_i32_1 = arith.constant 0 : i32
    return %c0_i32, %c0_i32_0 : i32, i32
  }
  func.func @transform_3(%arg0: i32) -> (i32, i32) {
    %c0_i32 = arith.constant 0 : i32
    %c0_i32_0 = arith.constant 0 : i32
    %c0_i32_1 = arith.constant 0 : i32
    return %c0_i32, %c0_i32_0 : i32, i32
  }
  func.func @transform_4(%arg0: i32) -> (i32, i32) {
    %c0_i32 = arith.constant 0 : i32
    %c0_i32_0 = arith.constant 0 : i32
    %c0_i32_1 = arith.constant 0 : i32
    return %c0_i32, %c0_i32_0 : i32, i32
  }
  func.func @transform_5(%arg0: i32) -> (i32, i32) {
    %c0_i32 = arith.constant 0 : i32
    %c0_i32_0 = arith.constant 0 : i32
    %c0_i32_1 = arith.constant 0 : i32
    return %c0_i32, %c0_i32_0 : i32, i32
  }
  func.func @transform_6(%arg0: i32) -> (i32, i32) {
    %c0_i32 = arith.constant 0 : i32
    %c0_i32_0 = arith.constant 0 : i32
    %c0_i32_1 = arith.constant 0 : i32
    return %c0_i32, %c0_i32_0 : i32, i32
  }
  func.func @transform_7(%arg0: i32) -> (i32, i32) {
    %c0_i32 = arith.constant 0 : i32
    %c0_i32_0 = arith.constant 0 : i32
    return %arg0, %c0_i32 : i32, i32
  }
}

</mosaic_0001>

<llo_original>
// kernel: network_forward.1
$region0: #{network_forward.1}
  #allocation0 [shape = 'u32[]', space=smem, size = 0x4, offset = 0x4, fixed_abs, tag = 'smem constant byte address 0x4 - core index']
  #allocation1 [shape = 'u32[72,128]{1,0:T(1,128)}', space=vmem, size = 0x9000, scoped, tag = 'internal scratch']
  %s0 = inlined_call_operand.vmem [shape: f32[32,8], index: 0, kind: input, shape index: {}]
  %s1 = inlined_call_operand.vmem [shape: f32[8,128], index: 1, kind: input, shape index: {}]
  %s2 = inlined_call_operand.vmem [shape: f32[1,128], index: 2, kind: input, shape index: {}]
  %s3 = inlined_call_operand.vmem [shape: f32[128,128], index: 3, kind: input, shape index: {}]
  %s4 = inlined_call_operand.vmem [shape: f32[1,128], index: 4, kind: input, shape index: {}]
  %s5 = inlined_call_operand.vmem [shape: f32[128,128], index: 5, kind: input, shape index: {}]
  %s6 = inlined_call_operand.vmem [shape: f32[1,128], index: 6, kind: input, shape index: {}]
  %s7 = inlined_call_operand.vmem [shape: f32[32,128], index: 7, kind: output, shape index: {}]
  %s8 = sld [smem:[#allocation0]]
  $region38: #{network_forward.1} parent=0
    _
  %s10 = ssub.s32 1, %s8
  %s11 = scalar_select 0, %s10, %s8
  // Predicated region
  $region2: #{network_forward.1} parent=0 // pred_check
    _
  $region3: #{network_forward.1} parent=0 // pred_check_branch
    %13 = sbr.rel (0) target = $region5
  $region4: #{network_forward.1} parent=0 // pred_region
    _
  $region5: #{network_forward.1} parent=0 // pred_fallthru
    _
  // Predicated region
  $region6: #{network_forward.1} parent=0 // pred_check
    _
  $region7: #{network_forward.1} parent=0 // pred_check_branch
    %15 = sbr.rel (0) target = $region9
  $region8: #{network_forward.1} parent=0 // pred_region
    _
  $region9: #{network_forward.1} parent=0 // pred_fallthru
    _
  // Predicated region
  $region10: #{network_forward.1} parent=0 // pred_check
    _
  $region11: #{network_forward.1} parent=0 // pred_check_branch
    %17 = sbr.rel (0) target = $region13
  $region12: #{network_forward.1} parent=0 // pred_region
    _
  $region13: #{network_forward.1} parent=0 // pred_fallthru
    _
  // Predicated region
  $region14: #{network_forward.1} parent=0 // pred_check
    _
  $region15: #{network_forward.1} parent=0 // pred_check_branch
    %19 = sbr.rel (0) target = $region17
  $region16: #{network_forward.1} parent=0 // pred_region
    _
  $region17: #{network_forward.1} parent=0 // pred_fallthru
    _
  // Predicated region
  $region18: #{network_forward.1} parent=0 // pred_check
    _
  $region19: #{network_forward.1} parent=0 // pred_check_branch
    %21 = sbr.rel (0) target = $region21
  $region20: #{network_forward.1} parent=0 // pred_region
    _
  $region21: #{network_forward.1} parent=0 // pred_fallthru
    _
  // Predicated region
  $region22: #{network_forward.1} parent=0 // pred_check
    _
  $region23: #{network_forward.1} parent=0 // pred_check_branch
    %23 = sbr.rel (0) target = $region25
  $region24: #{network_forward.1} parent=0 // pred_region
    _
  $region25: #{network_forward.1} parent=0 // pred_fallthru
    _
  // Predicated region
  $region26: #{network_forward.1} parent=0 // pred_check
    _
  $region27: #{network_forward.1} parent=0 // pred_check_branch
    %25 = sbr.rel (0) target = $region29
  $region28: #{network_forward.1} parent=0 // pred_region
    _
  $region29: #{network_forward.1} parent=0 // pred_fallthru
    _
  %v26 = vld [vmem:[%s0] sm:$0xff]
  %v27 = vld [vmem:[%s0 + $0x8] sm:$0xff]
  %v28 = vld [vmem:[%s0 + $0x10] sm:$0xff]
  %v29 = vld [vmem:[%s0 + $0x18] sm:$0xff]
  %v30 = vld [vmem:[%s1] sm:$0xff]
  %v31 = vld [vmem:[%s2] sm:$0x1]
  %v33 = vperm.slane %v31, 0
  %vm35 = vcmask 64512
  %v37 = vsel %vm35, %v26, 0
  %v40 = vsel %vm35, %v27, 0
  %v43 = vsel %vm35, %v28, 0
  %v46 = vsel %vm35, %v29, 0
  %48 = vmatpush.msra.mxu0 0.0
  %49 = vmatpush.msra.mxu0 0.0
  %50 = vmatpush.msra.mxu0 0.0
  %51 = vmatpush.msra.mxu0 0.0
  %52 = vmatpush.msra.mxu0 0.0
  %53 = vmatpush.msra.mxu0 0.0
  %54 = vmatpush.msra.mxu0 0.0
  %55 = vmatpush.msra.mxu0 0.0
  %56 = vmatpush.msra.mxu0 0.0
  %57 = vmatpush.msra.mxu0 0.0
  %58 = vmatpush.msra.mxu0 0.0
  %59 = vmatpush.msra.mxu0 0.0
  %60 = vmatpush.msra.mxu0 0.0
  %61 = vmatpush.msra.mxu0 0.0
  %62 = vmatpush.msra.mxu0 0.0
  %63 = vmatpush.msra.mxu0 %v30
  %64 = vmatmul.f32.gmra.mxu0 %v37
  %v65 = vpop.f32.mrf.mxu0
  %v66 = vadd.f32 %v33, %v65
  %67 = vmatmul.f32.gmra.mxu0 %v40
  %v68 = vpop.f32.mrf.mxu0
  %v69 = vadd.f32 %v33, %v68
  %70 = vmatmul.f32.gmra.mxu0 %v43
  %v71 = vpop.f32.mrf.mxu0
  %v72 = vadd.f32 %v33, %v71
  %73 = vmatmul.f32.gmra.mxu0 %v46
  %v74 = vpop.f32.mrf.mxu0
  %v75 = vadd.f32 %v33, %v74
  %76 = vdwg.mxu0
  %v77 = vmax.f32 %v66, 0.0
  %v78 = vmax.f32 %v69, 0.0
  %v79 = vmax.f32 %v72, 0.0
  %v80 = vmax.f32 %v75, 0.0
  %v81 = vld [vmem:[%s3] sm:$0xff]
  %v82 = vld [vmem:[%s3 + $0x8] sm:$0xff]
  %v83 = vld [vmem:[%s3 + $0x10] sm:$0xff]
  %v84 = vld [vmem:[%s3 + $0x18] sm:$0xff]
  %v85 = vld [vmem:[%s3 + $0x20] sm:$0xff]
  %v86 = vld [vmem:[%s3 + $0x28] sm:$0xff]
  %v87 = vld [vmem:[%s3 + $0x30] sm:$0xff]
  %v88 = vld [vmem:[%s3 + $0x38] sm:$0xff]
  %v89 = vld [vmem:[%s3 + $0x40] sm:$0xff]
  %v90 = vld [vmem:[%s3 + $0x48] sm:$0xff]
  %v91 = vld [vmem:[%s3 + $0x50] sm:$0xff]
  %v92 = vld [vmem:[%s3 + $0x58] sm:$0xff]
  %v93 = vld [vmem:[%s3 + $0x60] sm:$0xff]
  %v94 = vld [vmem:[%s3 + $0x68] sm:$0xff]
  %v95 = vld [vmem:[%s3 + $0x70] sm:$0xff]
  %v96 = vld [vmem:[%s3 + $0x78] sm:$0xff]
  %v97 = vld [vmem:[%s4] sm:$0x1]
  %v99 = vperm.slane %v97, 0
  %101 = vmatpush.msra.mxu0 %v96
  %102 = vmatpush.msra.mxu0 %v95
  %103 = vmatpush.msra.mxu0 %v94
  %104 = vmatpush.msra.mxu0 %v93
  %105 = vmatpush.msra.mxu0 %v92
  %106 = vmatpush.msra.mxu0 %v91
  %107 = vmatpush.msra.mxu0 %v90
  %108 = vmatpush.msra.mxu0 %v89
  %109 = vmatpush.msra.mxu0 %v88
  %110 = vmatpush.msra.mxu0 %v87
  %111 = vmatpush.msra.mxu0 %v86
  %112 = vmatpush.msra.mxu0 %v85
  %113 = vmatpush.msra.mxu0 %v84
  %114 = vmatpush.msra.mxu0 %v83
  %115 = vmatpush.msra.mxu0 %v82
  %116 = vmatpush.msra.mxu0 %v81
  %117 = vmatmul.f32.gmra.mxu0 %v77
  %v118 = vpop.f32.mrf.mxu0
  %v119 = vadd.f32 %v99, %v118
  %120 = vmatmul.f32.gmra.mxu0 %v78
  %v121 = vpop.f32.mrf.mxu0
  %v122 = vadd.f32 %v99, %v121
  %123 = vmatmul.f32.gmra.mxu0 %v79
  %v124 = vpop.f32.mrf.mxu0
  %v125 = vadd.f32 %v99, %v124
  %126 = vmatmul.f32.gmra.mxu0 %v80
  %v127 = vpop.f32.mrf.mxu0
  %v128 = vadd.f32 %v99, %v127
  %129 = vdwg.mxu0
  %v130 = vmax.f32 %v119, 0.0
  %v131 = vmax.f32 %v122, 0.0
  %v132 = vmax.f32 %v125, 0.0
  %v133 = vmax.f32 %v128, 0.0
  %v134 = vld [vmem:[%s5] sm:$0xff]
  %v135 = vld [vmem:[%s5 + $0x8] sm:$0xff]
  %v136 = vld [vmem:[%s5 + $0x10] sm:$0xff]
  %v137 = vld [vmem:[%s5 + $0x18] sm:$0xff]
  %v138 = vld [vmem:[%s5 + $0x20] sm:$0xff]
  %v139 = vld [vmem:[%s5 + $0x28] sm:$0xff]
  %v140 = vld [vmem:[%s5 + $0x30] sm:$0xff]
  %v141 = vld [vmem:[%s5 + $0x38] sm:$0xff]
  %v142 = vld [vmem:[%s5 + $0x40] sm:$0xff]
  %v143 = vld [vmem:[%s5 + $0x48] sm:$0xff]
  %v144 = vld [vmem:[%s5 + $0x50] sm:$0xff]
  %v145 = vld [vmem:[%s5 + $0x58] sm:$0xff]
  %v146 = vld [vmem:[%s5 + $0x60] sm:$0xff]
  %v147 = vld [vmem:[%s5 + $0x68] sm:$0xff]
  %v148 = vld [vmem:[%s5 + $0x70] sm:$0xff]
  %v149 = vld [vmem:[%s5 + $0x78] sm:$0xff]
  %v150 = vld [vmem:[%s6] sm:$0x1]
  %v152 = vperm.slane %v150, 0
  %154 = vmatpush.msra.mxu0 %v149
  %155 = vmatpush.msra.mxu0 %v148
  %156 = vmatpush.msra.mxu0 %v147
  %157 = vmatpush.msra.mxu0 %v146
  %158 = vmatpush.msra.mxu0 %v145
  %159 = vmatpush.msra.mxu0 %v144
  %160 = vmatpush.msra.mxu0 %v143
  %161 = vmatpush.msra.mxu0 %v142
  %162 = vmatpush.msra.mxu0 %v141
  %163 = vmatpush.msra.mxu0 %v140
  %164 = vmatpush.msra.mxu0 %v139
  %165 = vmatpush.msra.mxu0 %v138
  %166 = vmatpush.msra.mxu0 %v137
  %167 = vmatpush.msra.mxu0 %v136
  %168 = vmatpush.msra.mxu0 %v135
  %169 = vmatpush.msra.mxu0 %v134
  %170 = vmatmul.f32.gmra.mxu0 %v130
  %v171 = vpop.f32.mrf.mxu0
  %v172 = vadd.f32 %v152, %v171
  %173 = vmatmul.f32.gmra.mxu0 %v131
  %v174 = vpop.f32.mrf.mxu0
  %v175 = vadd.f32 %v152, %v174
  %176 = vmatmul.f32.gmra.mxu0 %v132
  %v177 = vpop.f32.mrf.mxu0
  %v178 = vadd.f32 %v152, %v177
  %179 = vmatmul.f32.gmra.mxu0 %v133
  %v180 = vpop.f32.mrf.mxu0
  %v181 = vadd.f32 %v152, %v180
  %182 = vdwg.mxu0
  %183 = vst [vmem:[%s7] sm:$0xff] %v172
  %184 = vst [vmem:[%s7 + $0x8] sm:$0xff] %v175
  %185 = vst [vmem:[%s7 + $0x10] sm:$0xff] %v178
  %186 = vst [vmem:[%s7 + $0x18] sm:$0xff] %v181
  // Predicated region
  $region30: #{network_forward.1} parent=0 // pred_check
    _
  $region31: #{network_forward.1} parent=0 // pred_check_branch
    %188 = sbr.rel (0) target = $region33
  $region32: #{network_forward.1} parent=0 // pred_region
    _
  $region33: #{network_forward.1} parent=0 // pred_fallthru
    _
  // Predicated region
  $region34: #{network_forward.1} parent=0 // pred_check
    _
  $region35: #{network_forward.1} parent=0 // pred_check_branch
    %190 = sbr.rel (0) target = $region37
  $region36: #{network_forward.1} parent=0 // pred_region
    _
  $region37: #{network_forward.1} parent=0 // pred_fallthru
    _

</llo_original>
